<compile_context>
chip_gen: v5e
topology: v5e:2x2
jax: 0.10.0
libtpu: 0.0.40
codegen_flags: <defaults>
</compile_context>

<pallas_src>
import functools

import jax
import jax.numpy as jnp
from jax.experimental import pallas as pl
from jax.experimental.pallas import tpu as pltpu

LN_EPS = 1e-5


def _round_up(v: int, m: int) -> int:
    return (v + m - 1) // m * m


def _choose_tile(n: int, tile_n: int, row_align: int) -> int:
    """Row tile: multiple of row_align, <= tile_n, and small enough that the
    grid has >= 2 steps when possible (v7x has 2 TensorCores to shard over)."""
    tile_n = max(row_align, _round_up(tile_n, row_align))
    if n <= row_align:
        return row_align
    half = _round_up(-(-n // 2), row_align)      # ceil(n/2) rounded up
    return min(tile_n, half)


def _vmem_limit_bytes() -> int:
    """Generation-aware scoped VMEM limit: 3/4 of physical, capped at 64 MiB
    (=> 48 MiB on v7x, 64 MiB on v5e/v6e)."""
    cap = 64 * 1024 * 1024
    try:
        cap = int(pltpu.get_tpu_info().vmem_capacity_bytes)
    except Exception:  # info query unavailable -> conservative default
        pass
    return min(64 * 1024 * 1024, cap * 3 // 4)


def mlp_kernel(x_ref, w0_ref, b0_ref, g_ref, beta_ref, w1_ref, b1_ref, o_ref):
    # ---- layer 0: Linear(input_dim, hidden) on the MXU --------------------
    # x arrives in f32; cast to the MXU dtype in-kernel (free VPU work hidden
    # under the DMA, avoids a wrapper-side HBM round-trip for the cast copy).
    h = jnp.dot(x_ref[...].astype(w0_ref.dtype), w0_ref[...],
                preferred_element_type=jnp.float32)
    h = h + b0_ref[...]                      # (tile, H) + (1, H), f32

    # ---- LayerNorm over feature (lane) axis, single pass, f32 -------------
    # E[h] and E[h^2] are independent reductions (no serialized XLU chain);
    # gamma is folded into the rsqrt scale.
    mean = jnp.mean(h, axis=-1, keepdims=True)
    mean_sq = jnp.mean(h * h, axis=-1, keepdims=True)
    var = jnp.maximum(mean_sq - mean * mean, 0.0)
    scale = jax.lax.rsqrt(var + LN_EPS) * g_ref[...]   # (tile,1)*(1,H)
    hn = (h - mean) * scale + beta_ref[...]

    # ---- ReLU --------------------------------------------------------------
    hr = jnp.maximum(hn, 0.0)

    # ---- layer 1: Linear(hidden, output), bf16 MXU inputs, f32 acc --------
    out = jnp.dot(hr.astype(w1_ref.dtype), w1_ref[...],
                  preferred_element_type=jnp.float32)
    out = out + b1_ref[...]
    o_ref[...] = out.astype(o_ref.dtype)


def prepare_mlp_params(w0, b0, gamma, beta, w1, b1, mxu_dtype=jnp.bfloat16):
    """One-time weight preprocessing (hoisted out of the per-call jitted path).

    Casts weights to the MXU dtype, pads output columns to a multiple of 128
    (lane-dense unmasked stores) and reshapes biases / LN params to (1, D) f32.
    Returns (params_dict, d_out) where d_out is the unpadded output width.
    """
    d_hid = w0.shape[1]
    d_out = w1.shape[1]
    d_out_pad = _round_up(d_out, 128)
    if d_out_pad != d_out:
        w1 = jnp.pad(w1, ((0, 0), (0, d_out_pad - d_out)))
        b1 = jnp.pad(b1, ((0, d_out_pad - d_out),))
    params = dict(
        w0=w0.astype(mxu_dtype),
        b0=b0.reshape(1, d_hid).astype(jnp.float32),
        gamma=gamma.reshape(1, d_hid).astype(jnp.float32),
        beta=beta.reshape(1, d_hid).astype(jnp.float32),
        w1=w1.astype(mxu_dtype),
        b1=b1.reshape(1, d_out_pad).astype(jnp.float32),
    )
    return params, d_out


@functools.partial(jax.jit, static_argnames=("d_out", "tile_n", "out_dtype"))
def mlp_pallas(x, params, d_out, *, tile_n=512, out_dtype=None):
    """Fused MLP forward.  `params` must come from prepare_mlp_params()."""
    orig_shape = x.shape
    d_in = orig_shape[-1]
    x2 = x.reshape(-1, d_in)
    n = x2.shape[0]

    w0, b0 = params["w0"], params["b0"]
    gamma, beta = params["gamma"], params["beta"]
    w1, b1 = params["w1"], params["b1"]
    d_hid = w0.shape[1]
    d_out_pad = w1.shape[1]

    if out_dtype is None:
        out_dtype = x.dtype
    out_dtype = jnp.dtype(out_dtype)

    # Row tiling: f32 rows align to 8 sublanes, sub-32-bit output to 16
    # (packed tile).  Ragged N is zero-padded; padded rows are benign through
    # LayerNorm (var clamped >= 0, +eps) and sliced off afterwards.
    row_align = 16 if out_dtype.itemsize < 4 else 8
    tile = _choose_tile(n, tile_n, row_align)
    n_pad = _round_up(n, tile)
    if n_pad != n:
        x2 = jnp.pad(x2, ((0, n_pad - n), (0, 0)))

    grid = (n_pad // tile,)

    w_itemsize = jnp.dtype(w0.dtype).itemsize
    flops = 2 * n_pad * (d_in * d_hid + d_hid * d_out_pad)
    bytes_accessed = (
        n_pad * d_in * x2.dtype.itemsize
        + (d_in * d_hid + d_hid * d_out_pad) * w_itemsize
        + (3 * d_hid + d_out_pad) * 4
        + n_pad * d_out_pad * out_dtype.itemsize)
    cost = pl.CostEstimate(flops=flops, transcendentals=n_pad,
                           bytes_accessed=bytes_accessed)

    out = pl.pallas_call(
        mlp_kernel,
        out_shape=jax.ShapeDtypeStruct((n_pad, d_out_pad), out_dtype),
        grid_spec=pltpu.PrefetchScalarGridSpec(
            num_scalar_prefetch=0,
            grid=grid,
            in_specs=[
                pl.BlockSpec((tile, d_in), lambda i: (i, 0)),        # x tile (f32)
                pl.BlockSpec((d_in, d_hid), lambda i: (0, 0)),       # W0 resident
                pl.BlockSpec((1, d_hid), lambda i: (0, 0)),          # b0
                pl.BlockSpec((1, d_hid), lambda i: (0, 0)),          # LN gamma
                pl.BlockSpec((1, d_hid), lambda i: (0, 0)),          # LN beta
                pl.BlockSpec((d_hid, d_out_pad), lambda i: (0, 0)),  # W1 resident
                pl.BlockSpec((1, d_out_pad), lambda i: (0, 0)),      # b1
            ],
            out_specs=pl.BlockSpec((tile, d_out_pad), lambda i: (i, 0)),
        ),
        compiler_params=pltpu.CompilerParams(
            dimension_semantics=("parallel",),
            vmem_limit_bytes=_vmem_limit_bytes(),
        ),
        cost_estimate=cost,
    )(x2, w0, b0, gamma, beta, w1, b1)

    # Only pay for the slice copy when padding actually happened.
    if n_pad != n or d_out_pad != d_out:
        out = out[:n, :d_out]
    return out.reshape(*orig_shape[:-1], d_out)


def init_mlp_params(key, input_dim, hidden_dim, output_dim, dtype=jnp.float32):
    """Deterministic synthetic init matching nn.Linear/LayerNorm shapes.

    PyTorch Linear stores weight as (out, in); we keep (in, out) so the kernel
    does y = x @ W + b (same math as x @ weight.T + bias).
    """
    k0, k1, k2, k3 = jax.random.split(key, 4)
    s0 = 1.0 / jnp.sqrt(input_dim)
    s1 = 1.0 / jnp.sqrt(hidden_dim)
    w0 = jax.random.uniform(k0, (input_dim, hidden_dim), dtype, -s0, s0)
    b0 = jax.random.uniform(k1, (hidden_dim,), dtype, -s0, s0)
    gamma = jnp.ones((hidden_dim,), dtype)       # LayerNorm weight
    beta = jnp.zeros((hidden_dim,), dtype)       # LayerNorm bias
    w1 = jax.random.uniform(k2, (hidden_dim, output_dim), dtype, -s1, s1)
    b1 = jax.random.uniform(k3, (output_dim,), dtype, -s1, s1)
    return w0, b0, gamma, beta, w1, b1


def mlp_reference(x, w0, b0, gamma, beta, w1, b1, mxu_dtype=jnp.bfloat16):
    """Precision-matched reference (same bf16 matmul inputs, f32 accumulate)."""
    shape = x.shape
    x2 = x.reshape(-1, shape[-1]).astype(mxu_dtype)
    h = jnp.dot(x2, w0.astype(mxu_dtype),
                preferred_element_type=jnp.float32) + b0
    mean = h.mean(-1, keepdims=True)
    var = ((h - mean) ** 2).mean(-1, keepdims=True)
    h = (h - mean) * jax.lax.rsqrt(var + LN_EPS) * gamma + beta
    h = jnp.maximum(h, 0.0)
    out = jnp.dot(h.astype(mxu_dtype), w1.astype(mxu_dtype),
                  preferred_element_type=jnp.float32) + b1
    return out.reshape(*shape[:-1], out.shape[-1]).astype(x.dtype)


if __name__ == "__main__":
    # Small shapes consistent with the module defaults: batch=2, seq=8, dims=256.
    batch, seq = 2, 8
    input_dim = hidden_dim = output_dim = 256

    key = jax.random.PRNGKey(0)
    kx, kp = jax.random.split(key)
    x = jax.random.normal(kx, (batch, seq, input_dim), jnp.float32)
    raw_params = init_mlp_params(kp, input_dim, hidden_dim, output_dim)

    # One-time weight preprocessing, outside the per-call jitted path.
    params, d_out = prepare_mlp_params(*raw_params)

    out = mlp_pallas(x, params, d_out)
    out = jax.block_until_ready(out)

    ref = mlp_reference(x, *raw_params)
    assert out.shape == (batch, seq, output_dim)
    max_err = float(jnp.max(jnp.abs(out - ref)))
    assert jnp.allclose(out, ref, atol=2e-3, rtol=2e-3), (
        f"mismatch vs reference, max_err={max_err}")
    print("KERNEL_OK")
</pallas_src>

<mosaic_0001>
module attributes {stable_mosaic.version = 11 : i64} {
  func.func @mlp_kernel(%arg0: i32, %arg1: memref<8x256xf32, #tpu.memory_space<vmem>>, %arg2: memref<256x256xbf16, #tpu.memory_space<vmem>>, %arg3: memref<1x256xf32, #tpu.memory_space<vmem>>, %arg4: memref<1x256xf32, #tpu.memory_space<vmem>>, %arg5: memref<1x256xf32, #tpu.memory_space<vmem>>, %arg6: memref<256x256xbf16, #tpu.memory_space<vmem>>, %arg7: memref<1x256xf32, #tpu.memory_space<vmem>>, %arg8: memref<8x256xf32, #tpu.memory_space<vmem>>) attributes {dimension_semantics = [#tpu.dimension_semantics<parallel>], iteration_bounds = array<i64: 2>, scalar_prefetch = 0 : i64, scratch_operands = 0 : i64, tpu.core_type = #tpu.core_type<tc>, window_params = [{transform_indices = @transform_0, window_bounds = array<i64: 8, 256>}, {pipeline_mode = #tpu.pipeline_mode<synchronous>, transform_indices = @transform_1, window_bounds = array<i64: 256, 256>}, {pipeline_mode = #tpu.pipeline_mode<synchronous>, transform_indices = @transform_2, window_bounds = array<i64: 1, 256>}, {pipeline_mode = #tpu.pipeline_mode<synchronous>, transform_indices = @transform_3, window_bounds = array<i64: 1, 256>}, {pipeline_mode = #tpu.pipeline_mode<synchronous>, transform_indices = @transform_4, window_bounds = array<i64: 1, 256>}, {pipeline_mode = #tpu.pipeline_mode<synchronous>, transform_indices = @transform_5, window_bounds = array<i64: 256, 256>}, {pipeline_mode = #tpu.pipeline_mode<synchronous>, transform_indices = @transform_6, window_bounds = array<i64: 1, 256>}, {transform_indices = @transform_7, window_bounds = array<i64: 8, 256>}]} {
    %c0 = arith.constant 0 : index
    %c0_0 = arith.constant 0 : index
    %0 = vector.load %arg1[%c0, %c0_0] : memref<8x256xf32, #tpu.memory_space<vmem>>, vector<8x256xf32>
    %1 = arith.truncf %0 : vector<8x256xf32> to vector<8x256xbf16>
    %c0_1 = arith.constant 0 : index
    %c0_2 = arith.constant 0 : index
    %2 = vector.load %arg2[%c0_1, %c0_2] : memref<256x256xbf16, #tpu.memory_space<vmem>>, vector<256x256xbf16>
    %cst = arith.constant dense<0.000000e+00> : vector<8x256xf32>
    %3 = tpu.matmul %1, %2, %cst {dimension_numbers = #tpu.dot_dimension_numbers<[1], [0], [0], [1], [0, 0, 1, 1], [], []>} : vector<8x256xbf16>, vector<256x256xbf16>, vector<8x256xf32> -> vector<8x256xf32>
    %c0_3 = arith.constant 0 : index
    %c0_4 = arith.constant 0 : index
    %4 = vector.load %arg3[%c0_3, %c0_4] : memref<1x256xf32, #tpu.memory_space<vmem>>, vector<1x256xf32>
    %5 = vector.broadcast %4 : vector<1x256xf32> to vector<8x256xf32>
    %6 = arith.addf %3, %5 : vector<8x256xf32>
    %cst_5 = arith.constant dense<0.000000e+00> : vector<8xf32>
    %7 = vector.multi_reduction <add>, %6, %cst_5 [1] : vector<8x256xf32> to vector<8xf32>
    %8 = vector.shape_cast %7 : vector<8xf32> to vector<8x1xf32>
    %cst_6 = arith.constant 2.560000e+02 : f32
    %9 = vector.broadcast %cst_6 : f32 to vector<8x1xf32>
    %10 = arith.divf %8, %9 : vector<8x1xf32>
    %11 = arith.mulf %6, %6 : vector<8x256xf32>
    %cst_7 = arith.constant dense<0.000000e+00> : vector<8xf32>
    %12 = vector.multi_reduction <add>, %11, %cst_7 [1] : vector<8x256xf32> to vector<8xf32>
    %13 = vector.shape_cast %12 : vector<8xf32> to vector<8x1xf32>
    %cst_8 = arith.constant 2.560000e+02 : f32
    %14 = vector.broadcast %cst_8 : f32 to vector<8x1xf32>
    %15 = arith.divf %13, %14 : vector<8x1xf32>
    %16 = arith.mulf %10, %10 : vector<8x1xf32>
    %17 = arith.subf %15, %16 : vector<8x1xf32>
    %cst_9 = arith.constant 0.000000e+00 : f32
    %18 = vector.broadcast %cst_9 : f32 to vector<8x1xf32>
    %19 = arith.maximumf %17, %18 : vector<8x1xf32>
    %cst_10 = arith.constant 9.99999974E-6 : f32
    %20 = vector.broadcast %cst_10 : f32 to vector<8x1xf32>
    %21 = arith.addf %19, %20 : vector<8x1xf32>
    %22 = math.rsqrt %21 : vector<8x1xf32>
    %c0_11 = arith.constant 0 : index
    %c0_12 = arith.constant 0 : index
    %23 = vector.load %arg4[%c0_11, %c0_12] : memref<1x256xf32, #tpu.memory_space<vmem>>, vector<1x256xf32>
    %24 = vector.broadcast %22 : vector<8x1xf32> to vector<8x256xf32>
    %25 = vector.broadcast %23 : vector<1x256xf32> to vector<8x256xf32>
    %26 = arith.mulf %24, %25 : vector<8x256xf32>
    %27 = vector.broadcast %10 : vector<8x1xf32> to vector<8x256xf32>
    %28 = arith.subf %6, %27 : vector<8x256xf32>
    %29 = arith.mulf %28, %26 : vector<8x256xf32>
    %c0_13 = arith.constant 0 : index
    %c0_14 = arith.constant 0 : index
    %30 = vector.load %arg5[%c0_13, %c0_14] : memref<1x256xf32, #tpu.memory_space<vmem>>, vector<1x256xf32>
    %31 = vector.broadcast %30 : vector<1x256xf32> to vector<8x256xf32>
    %32 = arith.addf %29, %31 : vector<8x256xf32>
    %cst_15 = arith.constant 0.000000e+00 : f32
    %33 = vector.broadcast %cst_15 : f32 to vector<8x256xf32>
    %34 = arith.maximumf %32, %33 : vector<8x256xf32>
    %35 = arith.truncf %34 : vector<8x256xf32> to vector<8x256xbf16>
    %c0_16 = arith.constant 0 : index
    %c0_17 = arith.constant 0 : index
    %36 = vector.load %arg6[%c0_16, %c0_17] : memref<256x256xbf16, #tpu.memory_space<vmem>>, vector<256x256xbf16>
    %cst_18 = arith.constant dense<0.000000e+00> : vector<8x256xf32>
    %37 = tpu.matmul %35, %36, %cst_18 {dimension_numbers = #tpu.dot_dimension_numbers<[1], [0], [0], [1], [0, 0, 1, 1], [], []>} : vector<8x256xbf16>, vector<256x256xbf16>, vector<8x256xf32> -> vector<8x256xf32>
    %c0_19 = arith.constant 0 : index
    %c0_20 = arith.constant 0 : index
    %38 = vector.load %arg7[%c0_19, %c0_20] : memref<1x256xf32, #tpu.memory_space<vmem>>, vector<1x256xf32>
    %39 = vector.broadcast %38 : vector<1x256xf32> to vector<8x256xf32>
    %40 = arith.addf %37, %39 : vector<8x256xf32>
    %c0_21 = arith.constant 0 : index
    %c0_22 = arith.constant 0 : index
    %41 = vector.load %arg8[%c0_21, %c0_22] : memref<8x256xf32, #tpu.memory_space<vmem>>, vector<8x256xf32>
    tpu.vector_store %arg8[%c0_21, %c0_22], %40 {strides = array<i32>} : memref<8x256xf32, #tpu.memory_space<vmem>>, vector<8x256xf32>,
    return
  }
  func.func @transform_0(%arg0: i32) -> (i32, i32) {
    %c0_i32 = arith.constant 0 : i32
    %c0_i32_0 = arith.constant 0 : i32
    return %arg0, %c0_i32 : i32, i32
  }
  func.func @transform_1(%arg0: i32) -> (i32, i32) {
    %c0_i32 = arith.constant 0 : i32
    %c0_i32_0 = arith.constant 0 : i32
    %c0_i32_1 = arith.constant 0 : i32
    return %c0_i32, %c0_i32_0 : i32, i32
  }
  func.func @transform_2(%arg0: i32) -> (i32, i32) {
    %c0_i32 = arith.constant 0 : i32
    %c0_i32_0 = arith.constant 0 : i32
    %c0_i32_1 = arith.constant 0 : i32
    return %c0_i32, %c0_i32_0 : i32, i32
  }
  func.func @transform_3(%arg0: i32) -> (i32, i32) {
    %c0_i32 = arith.constant 0 : i32
    %c0_i32_0 = arith.constant 0 : i32
    %c0_i32_1 = arith.constant 0 : i32
    return %c0_i32, %c0_i32_0 : i32, i32
  }
  func.func @transform_4(%arg0: i32) -> (i32, i32) {
    %c0_i32 = arith.constant 0 : i32
    %c0_i32_0 = arith.constant 0 : i32
    %c0_i32_1 = arith.constant 0 : i32
    return %c0_i32, %c0_i32_0 : i32, i32
  }
  func.func @transform_5(%arg0: i32) -> (i32, i32) {
    %c0_i32 = arith.constant 0 : i32
    %c0_i32_0 = arith.constant 0 : i32
    %c0_i32_1 = arith.constant 0 : i32
    return %c0_i32, %c0_i32_0 : i32, i32
  }
  func.func @transform_6(%arg0: i32) -> (i32, i32) {
    %c0_i32 = arith.constant 0 : i32
    %c0_i32_0 = arith.constant 0 : i32
    %c0_i32_1 = arith.constant 0 : i32
    return %c0_i32, %c0_i32_0 : i32, i32
  }
  func.func @transform_7(%arg0: i32) -> (i32, i32) {
    %c0_i32 = arith.constant 0 : i32
    %c0_i32_0 = arith.constant 0 : i32
    return %arg0, %c0_i32 : i32, i32
  }
}

</mosaic_0001>

<llo_original>
// kernel: mlp_pallas.1
$region0: #{mlp_pallas.1}
  #allocation0 [shape = 'u32[]', space=smem, size = 0x4, offset = 0x4, fixed_abs, tag = 'smem constant byte address 0x4 - core index']
  #allocation1 [shape = 'u32[72,128]{1,0:T(1,128)}', space=vmem, size = 0x9000, scoped, tag = 'internal scratch']
  %s0 = inlined_call_operand.hbm [shape: f32[16,256], index: 0, kind: input, shape index: {}]
  %s1 = inlined_call_operand.hbm [shape: bf16[256,256], index: 1, kind: input, shape index: {}]
  %s2 = inlined_call_operand.hbm [shape: f32[1,256], index: 2, kind: input, shape index: {}]
  %s3 = inlined_call_operand.vmem [shape: f32[1,256], index: 3, kind: input, shape index: {}]
  %s4 = inlined_call_operand.hbm [shape: f32[1,256], index: 4, kind: input, shape index: {}]
  %s5 = inlined_call_operand.hbm [shape: bf16[256,256], index: 5, kind: input, shape index: {}]
  %s6 = inlined_call_operand.hbm [shape: f32[1,256], index: 6, kind: input, shape index: {}]
  %s7 = inlined_call_operand.hbm [shape: f32[16,256], index: 7, kind: output, shape index: {}]
  %s8 = sld [smem:[#allocation0]]
  $region85: #{mlp_pallas.1} parent=0
    _
  %s10 = ssub.s32 1, %s8
  %s11 = scalar_select 0, %s10, %s8
  $region1: #{mlp_pallas.1} parent=0
    #allocation2 [shape = 'u8[16384]{0}', space=vmem, size = 0x4000, scoped, tag = 'input window, operand 0']
    #allocation3 [shape = 's32[2]{0}', space=sflag, size = 0x8, scoped, tag = 'scoped memory for mlp_pallas.1']
    #allocation4 [shape = 's32[2]{0}', space=sflag, size = 0x8, scoped, tag = 'scoped memory for mlp_pallas.1']
    #allocation5 [shape = 'u8[131072]{0}', space=vmem, size = 0x20000, scoped, tag = 'input window, operand 1, single buffered']
    #allocation6 [shape = 's32[1]{0}', space=sflag, size = 0x4, scoped, tag = 'scoped memory for mlp_pallas.1']
    #allocation7 [shape = 'u8[1024]{0}', space=vmem, size = 0x400, scoped, tag = 'input window, operand 2, single buffered']
    #allocation8 [shape = 'u8[1024]{0}', space=vmem, size = 0x400, scoped, tag = 'input window, operand 4, single buffered']
    #allocation9 [shape = 's32[1]{0}', space=sflag, size = 0x4, scoped, tag = 'scoped memory for mlp_pallas.1']
    #allocation10 [shape = 'u8[131072]{0}', space=vmem, size = 0x20000, scoped, tag = 'input window, operand 5, single buffered']
    #allocation11 [shape = 'u8[1024]{0}', space=vmem, size = 0x400, scoped, tag = 'input window, operand 6, single buffered']
    #allocation12 [shape = 's32[1]{0}', space=sflag, size = 0x4, scoped, tag = 'scoped memory for mlp_pallas.1']
    #allocation13 [shape = 'u8[16384]{0}', space=vmem, size = 0x4000, scoped, tag = 'output window, operand 0']
    %12 = vsyncpa [#allocation3], 0
    %s13 = scalar_lea.sflag [#allocation3], 1
    %14 = vsyncpa %s13, 0
    %15 = vsyncpa [#allocation6], 0
    %16 = vsyncpa [#allocation9], 0
    %17 = vsyncpa [#allocation12], 0
    %18 = vsyncpa [#allocation4], 0
    %s19 = scalar_lea.sflag [#allocation4], 1
    %20 = vsyncpa %s19, 0
    loop: start=0, step=1, limit=4
    $region2: #{mlp_pallas.1} parent=1 // loop_pre_header
      _
    $region3: #{mlp_pallas.1} parent=1 // loop_header
      %s22 = sphi 0, %s26
      %p23 = scmp.ge.s32.totalorder %s22, 4
      %s32 = sphi 0, %s34
      %s35 = sphi 0, %s32
      %s36 = sphi 0, %s35
      %s52 = sphi 0, %s36
      %s56 = sphi 0, %s56
      %s58 = sphi 0, %s56
      %s59 = sphi 0, %s58
      %s73 = sphi 0, %s59
      %s77 = sphi 0, %s77
      %s79 = sphi 0, %s77
      %s80 = sphi 0, %s79
      %s94 = sphi 0, %s80
      %s98 = sphi 0, %s98
      %s100 = sphi 0, %s98
      %s101 = sphi 0, %s100
      %s115 = sphi 0, %s101
      %s119 = sphi 0, %s119
      %s121 = sphi 0, %s119
      %s122 = sphi 0, %s121
      %s136 = sphi 0, %s122
      %s140 = sphi 0, %s140
      %s142 = sphi 0, %s140
      %s143 = sphi 0, %s142
      %s157 = sphi 0, %s143
      %s161 = sphi 0, %s161
      %s163 = sphi 0, %s161
      %s164 = sphi 0, %s163
      %s178 = sphi 0, %s164
      %s184 = sphi 0, %s186
      %s187 = sphi 0, %s184
      %s188 = sphi 0, %s187
      %s204 = sphi 0, %s188
    $region4: #{mlp_pallas.1} parent=1 // loop_header_branch
      %25 = sbr.rel (%p23) target = $region8
    $region5: #{mlp_pallas.1} parent=1 // loop_body
      %s27 = ssub.s32 %s22, 1
      %s28 = ssub.s32 %s22, 2
      %s29 = sadd.s32 %s22, 1
      %s30 = ssub.s32 %s22, %s29
      %p31 = scmp.eq.s32.totalorder %s30, 0
      %s33 = sadd.s32 %s32, 1
      %s34 = scalar_select %p31, %s32, %s33
      %p37 = pneg %p31
      %p38 = scmp.eq.s32.totalorder %s22, 1
      %p39 = por %p37, %p38
      %p40 = scmp.ne.s32.totalorder %s32, %s35
      %p41 = scmp.eq.s32.totalorder %s22, 0
      %p42 = por %p40, %p41
      %p43 = scmp.ne.s32.totalorder %s32, %s35
      %p44 = scmp.eq.s32.totalorder %s27, 1
      %p45 = por %p43, %p44
      %p46 = scmp.ne.s32.totalorder %s35, %s36
      %p47 = scmp.eq.s32.totalorder %s27, 0
      %p48 = por %p46, %p47
      %p49 = scmp.ne.s32.totalorder %s35, %s36
      %p50 = scmp.eq.s32.totalorder %s28, 1
      %p51 = por %p49, %p50
      %p53 = scmp.ne.s32.totalorder %s36, %s52
      %p54 = scmp.eq.s32.totalorder %s28, 0
      %p55 = por %p53, %p54
      %s57 = sadd.s32 %s56, 1
      %p60 = scmp.eq.s32.totalorder %s22, 1
      %p61 = scmp.ne.s32.totalorder %s56, %s58
      %p62 = scmp.eq.s32.totalorder %s22, 0
      %p63 = por %p61, %p62
      %p64 = scmp.ne.s32.totalorder %s56, %s58
      %p65 = scmp.eq.s32.totalorder %s27, 1
      %p66 = por %p64, %p65
      %p67 = scmp.ne.s32.totalorder %s58, %s59
      %p68 = scmp.eq.s32.totalorder %s27, 0
      %p69 = por %p67, %p68
      %p70 = scmp.ne.s32.totalorder %s58, %s59
      %p71 = scmp.eq.s32.totalorder %s28, 1
      %p72 = por %p70, %p71
      %p74 = scmp.ne.s32.totalorder %s59, %s73
      %p75 = scmp.eq.s32.totalorder %s28, 0
      %p76 = por %p74, %p75
      %s78 = sadd.s32 %s77, 1
      %p81 = scmp.eq.s32.totalorder %s22, 1
      %p82 = scmp.ne.s32.totalorder %s77, %s79
      %p83 = scmp.eq.s32.totalorder %s22, 0
      %p84 = por %p82, %p83
      %p85 = scmp.ne.s32.totalorder %s77, %s79
      %p86 = scmp.eq.s32.totalorder %s27, 1
      %p87 = por %p85, %p86
      %p88 = scmp.ne.s32.totalorder %s79, %s80
      %p89 = scmp.eq.s32.totalorder %s27, 0
      %p90 = por %p88, %p89
      %p91 = scmp.ne.s32.totalorder %s79, %s80
      %p92 = scmp.eq.s32.totalorder %s28, 1
      %p93 = por %p91, %p92
      %p95 = scmp.ne.s32.totalorder %s80, %s94
      %p96 = scmp.eq.s32.totalorder %s28, 0
      %p97 = por %p95, %p96
      %s99 = sadd.s32 %s98, 1
      %p102 = scmp.eq.s32.totalorder %s22, 1
      %p103 = scmp.ne.s32.totalorder %s98, %s100
      %p104 = scmp.eq.s32.totalorder %s22, 0
      %p105 = por %p103, %p104
      %p106 = scmp.ne.s32.totalorder %s98, %s100
      %p107 = scmp.eq.s32.totalorder %s27, 1
      %p108 = por %p106, %p107
      %p109 = scmp.ne.s32.totalorder %s100, %s101
      %p110 = scmp.eq.s32.totalorder %s27, 0
      %p111 = por %p109, %p110
      %p112 = scmp.ne.s32.totalorder %s100, %s101
      %p113 = scmp.eq.s32.totalorder %s28, 1
      %p114 = por %p112, %p113
      %p116 = scmp.ne.s32.totalorder %s101, %s115
      %p117 = scmp.eq.s32.totalorder %s28, 0
      %p118 = por %p116, %p117
      %s120 = sadd.s32 %s119, 1
      %p123 = scmp.eq.s32.totalorder %s22, 1
      %p124 = scmp.ne.s32.totalorder %s119, %s121
      %p125 = scmp.eq.s32.totalorder %s22, 0
      %p126 = por %p124, %p125
      %p127 = scmp.ne.s32.totalorder %s119, %s121
      %p128 = scmp.eq.s32.totalorder %s27, 1
      %p129 = por %p127, %p128
      %p130 = scmp.ne.s32.totalorder %s121, %s122
      %p131 = scmp.eq.s32.totalorder %s27, 0
      %p132 = por %p130, %p131
      %p133 = scmp.ne.s32.totalorder %s121, %s122
      %p134 = scmp.eq.s32.totalorder %s28, 1
      %p135 = por %p133, %p134
      %p137 = scmp.ne.s32.totalorder %s122, %s136
      %p138 = scmp.eq.s32.totalorder %s28, 0
      %p139 = por %p137, %p138
      %s141 = sadd.s32 %s140, 1
      %p144 = scmp.eq.s32.totalorder %s22, 1
      %p145 = scmp.ne.s32.totalorder %s140, %s142
      %p146 = scmp.eq.s32.totalorder %s22, 0
      %p147 = por %p145, %p146
      %p148 = scmp.ne.s32.totalorder %s140, %s142
      %p149 = scmp.eq.s32.totalorder %s27, 1
      %p150 = por %p148, %p149
      %p151 = scmp.ne.s32.totalorder %s142, %s143
      %p152 = scmp.eq.s32.totalorder %s27, 0
      %p153 = por %p151, %p152
      %p154 = scmp.ne.s32.totalorder %s142, %s143
      %p155 = scmp.eq.s32.totalorder %s28, 1
      %p156 = por %p154, %p155
      %p158 = scmp.ne.s32.totalorder %s143, %s157
      %p159 = scmp.eq.s32.totalorder %s28, 0
      %p160 = por %p158, %p159
      %s162 = sadd.s32 %s161, 1
      %p165 = scmp.eq.s32.totalorder %s22, 1
      %p166 = scmp.ne.s32.totalorder %s161, %s163
      %p167 = scmp.eq.s32.totalorder %s22, 0
      %p168 = por %p166, %p167
      %p169 = scmp.ne.s32.totalorder %s161, %s163
      %p170 = scmp.eq.s32.totalorder %s27, 1
      %p171 = por %p169, %p170
      %p172 = scmp.ne.s32.totalorder %s163, %s164
      %p173 = scmp.eq.s32.totalorder %s27, 0
      %p174 = por %p172, %p173
      %p175 = scmp.ne.s32.totalorder %s163, %s164
      %p176 = scmp.eq.s32.totalorder %s28, 1
      %p177 = por %p175, %p176
      %p179 = scmp.ne.s32.totalorder %s164, %s178
      %p180 = scmp.eq.s32.totalorder %s28, 0
      %p181 = por %p179, %p180
      %s182 = ssub.s32 %s22, %s29
      %p183 = scmp.eq.s32.totalorder %s182, 0
      %s185 = sadd.s32 %s184, 1
      %s186 = scalar_select %p183, %s184, %s185
      %p189 = pneg %p183
      %p190 = scmp.eq.s32.totalorder %s22, 1
      %p191 = por %p189, %p190
      %p192 = scmp.ne.s32.totalorder %s184, %s187
      %p193 = scmp.eq.s32.totalorder %s22, 0
      %p194 = por %p192, %p193
      %p195 = scmp.ne.s32.totalorder %s184, %s187
      %p196 = scmp.eq.s32.totalorder %s27, 1
      %p197 = por %p195, %p196
      %p198 = scmp.ne.s32.totalorder %s187, %s188
      %p199 = scmp.eq.s32.totalorder %s27, 0
      %p200 = por %p198, %p199
      %p201 = scmp.ne.s32.totalorder %s187, %s188
      %p202 = scmp.eq.s32.totalorder %s28, 1
      %p203 = por %p201, %p202
      %p205 = scmp.ne.s32.totalorder %s188, %s204
      %p206 = scmp.eq.s32.totalorder %s28, 0
      %p207 = por %p205, %p206
      %p208 = scmp.le.s32.totalorder 1, %s22
      %p209 = scmp.lt.s32.totalorder %s22, 3
      %p210 = pnand %p208, %p209
      %p211 = pneg %p210
      // Predicated region
      $region9: #{mlp_pallas.1} parent=5 // pred_check
        _
      $region10: #{mlp_pallas.1} parent=5 // pred_check_branch
        %213 = sbr.rel (%p210) target = $region12
      $region11: #{mlp_pallas.1} parent=5 // pred_region
        %s214 = ssub.s32 %s22, 1
        // Predicated region
        $region13: #{mlp_pallas.1} parent=11 // pred_check
          %p215 = pneg %p69
        $region14: #{mlp_pallas.1} parent=11 // pred_check_branch
          %217 = sbr.rel (%p215) target = $region16
        $region15: #{mlp_pallas.1} parent=11 // pred_region
          %219 = vsyncadd [#allocation6], 0
          %s220 = sshll.u32 %s1, 4
          %s221 = int_to_ptr.hbm [resolvable:$true] %s220
          %s222 = sshll.u32 [#allocation5], 4
          %s223 = int_to_ptr.vmem [resolvable:$true] %s222
          %228 = dma.hbm_to_vmem [thread:$0]  %s221, 4096, %s223, [#allocation6], 128, 128, 8
        $region16: #{mlp_pallas.1} parent=11 // pred_fallthru
          _
        // Predicated region
        $region17: #{mlp_pallas.1} parent=11 // pred_check
          %p229 = pneg %p90
        $region18: #{mlp_pallas.1} parent=11 // pred_check_branch
          %231 = sbr.rel (%p229) target = $region20
        $region19: #{mlp_pallas.1} parent=11 // pred_region
          %233 = vsyncadd [#allocation6], 0
          %s235 = sshll.u32 %s2, 4
          %s236 = int_to_ptr.hbm [resolvable:$true] %s235
          %s237 = sshll.u32 [#allocation7], 4
          %s238 = int_to_ptr.vmem [resolvable:$true] %s237
          %240 = dma.hbm_to_vmem [thread:$0]  %s236, 32, %s238, [#allocation6]
        $region20: #{mlp_pallas.1} parent=11 // pred_fallthru
          _
        // Predicated region
        $region21: #{mlp_pallas.1} parent=11 // pred_check
          %p241 = pneg %p111
        $region22: #{mlp_pallas.1} parent=11 // pred_check_branch
          %243 = sbr.rel (%p241) target = $region24
        $region23: #{mlp_pallas.1} parent=11 // pred_region
          _
        $region24: #{mlp_pallas.1} parent=11 // pred_fallthru
          _
        // Predicated region
        $region25: #{mlp_pallas.1} parent=11 // pred_check
          %p244 = pneg %p132
        $region26: #{mlp_pallas.1} parent=11 // pred_check_branch
          %246 = sbr.rel (%p244) target = $region28
        $region27: #{mlp_pallas.1} parent=11 // pred_region
          %248 = vsyncadd [#allocation9], 0
          %s250 = sshll.u32 %s4, 4
          %s251 = int_to_ptr.hbm [resolvable:$true] %s250
          %s252 = sshll.u32 [#allocation8], 4
          %s253 = int_to_ptr.vmem [resolvable:$true] %s252
          %255 = dma.hbm_to_vmem [thread:$0]  %s251, 32, %s253, [#allocation9]
        $region28: #{mlp_pallas.1} parent=11 // pred_fallthru
          _
        // Predicated region
        $region29: #{mlp_pallas.1} parent=11 // pred_check
          %p256 = pneg %p153
        $region30: #{mlp_pallas.1} parent=11 // pred_check_branch
          %258 = sbr.rel (%p256) target = $region32
        $region31: #{mlp_pallas.1} parent=11 // pred_region
          %260 = vsyncadd [#allocation9], 0
          %s261 = sshll.u32 %s5, 4
          %s262 = int_to_ptr.hbm [resolvable:$true] %s261
          %s263 = sshll.u32 [#allocation10], 4
          %s264 = int_to_ptr.vmem [resolvable:$true] %s263
          %269 = dma.hbm_to_vmem [thread:$0]  %s262, 4096, %s264, [#allocation9], 128, 128, 8
        $region32: #{mlp_pallas.1} parent=11 // pred_fallthru
          _
        // Predicated region
        $region33: #{mlp_pallas.1} parent=11 // pred_check
          %p270 = pneg %p174
        $region34: #{mlp_pallas.1} parent=11 // pred_check_branch
          %272 = sbr.rel (%p270) target = $region36
        $region35: #{mlp_pallas.1} parent=11 // pred_region
          %274 = vsyncadd [#allocation12], 0
          %s276 = sshll.u32 %s6, 4
          %s277 = int_to_ptr.hbm [resolvable:$true] %s276
          %s278 = sshll.u32 [#allocation11], 4
          %s279 = int_to_ptr.vmem [resolvable:$true] %s278
          %281 = dma.hbm_to_vmem [thread:$0]  %s277, 32, %s279, [#allocation12]
        $region36: #{mlp_pallas.1} parent=11 // pred_fallthru
          _
      $region12: #{mlp_pallas.1} parent=5 // pred_fallthru
        _
      %p282 = scmp.lt.s32.totalorder %s22, 2
      // Predicated region
      $region37: #{mlp_pallas.1} parent=5 // pred_check
        %p283 = pneg %p282
      $region38: #{mlp_pallas.1} parent=5 // pred_check_branch
        %285 = sbr.rel (%p283) target = $region40
      $region39: #{mlp_pallas.1} parent=5 // pred_region
        // Predicated region
        $region41: #{mlp_pallas.1} parent=39 // pred_check
          %p286 = pneg %p42
        $region42: #{mlp_pallas.1} parent=39 // pred_check_branch
          %288 = sbr.rel (%p286) target = $region44
        $region43: #{mlp_pallas.1} parent=39 // pred_region
          %s289 = sand.u32 %s32, 1
          %s290 = scalar_lea.sflag [#allocation3], %s289
          %s291 = sand.u32 %s32, 1
          %s292 = smul.addr %s291, 16
          %s293 = scalar_lea.vmem [#allocation2], %s292
          %295 = vsyncadd %s290, 0
          %s296 = smul.addr %s22, 2
          %s297 = smul.addr %s296, 8
          %s298 = scalar_lea.hbm %s0, %s297
          %s300 = sshll.u32 %s298, 4
          %s301 = int_to_ptr.hbm [resolvable:$true] %s300
          %s302 = sshll.u32 %s293, 4
          %s303 = int_to_ptr.vmem [resolvable:$true] %s302
          %305 = dma.hbm_to_vmem [thread:$0]  %s301, 256, %s303, %s290
        $region44: #{mlp_pallas.1} parent=39 // pred_fallthru
          _
      $region40: #{mlp_pallas.1} parent=5 // pred_fallthru
        _
      %p306 = scmp.le.s32.totalorder 1, %s22
      %p307 = scmp.lt.s32.totalorder %s22, 3
      %p308 = pnand %p306, %p307
      %p309 = pneg %p308
      // Predicated region
      $region45: #{mlp_pallas.1} parent=5 // pred_check
        _
      $region46: #{mlp_pallas.1} parent=5 // pred_check_branch
        %311 = sbr.rel (%p308) target = $region48
      $region47: #{mlp_pallas.1} parent=5 // pred_region
        %s312 = ssub.s32 %s22, 1
        %s313 = sand.u32 %s35, 1
        %s314 = scalar_lea.sflag [#allocation3], %s313
        %s315 = sand.u32 %s35, 1
        %s316 = smul.addr %s315, 16
        %s317 = scalar_lea.vmem [#allocation2], %s316
        // Predicated region
        $region49: #{mlp_pallas.1} parent=47 // pred_check
          %p318 = pneg %p48
        $region50: #{mlp_pallas.1} parent=47 // pred_check_branch
          %320 = sbr.rel (%p318) target = $region52
        $region51: #{mlp_pallas.1} parent=47 // pred_region
          %322 = dma.done %s314, 256
        $region52: #{mlp_pallas.1} parent=47 // pred_fallthru
          _
        // Predicated region
        $region53: #{mlp_pallas.1} parent=47 // pred_check
          %p323 = pneg %p69
        $region54: #{mlp_pallas.1} parent=47 // pred_check_branch
          %325 = sbr.rel (%p323) target = $region56
        $region55: #{mlp_pallas.1} parent=47 // pred_region
          %327 = dma.done [#allocation6], 4096
        $region56: #{mlp_pallas.1} parent=47 // pred_fallthru
          _
        // Predicated region
        $region57: #{mlp_pallas.1} parent=47 // pred_check
          %p328 = pneg %p90
        $region58: #{mlp_pallas.1} parent=47 // pred_check_branch
          %330 = sbr.rel (%p328) target = $region60
        $region59: #{mlp_pallas.1} parent=47 // pred_region
          %332 = dma.done [#allocation6], 32
        $region60: #{mlp_pallas.1} parent=47 // pred_fallthru
          _
        // Predicated region
        $region61: #{mlp_pallas.1} parent=47 // pred_check
          %p333 = pneg %p132
        $region62: #{mlp_pallas.1} parent=47 // pred_check_branch
          %335 = sbr.rel (%p333) target = $region64
        $region63: #{mlp_pallas.1} parent=47 // pred_region
          %337 = dma.done [#allocation9], 32
        $region64: #{mlp_pallas.1} parent=47 // pred_fallthru
          _
        // Predicated region
        $region65: #{mlp_pallas.1} parent=47 // pred_check
          %p338 = pneg %p153
        $region66: #{mlp_pallas.1} parent=47 // pred_check_branch
          %340 = sbr.rel (%p338) target = $region68
        $region67: #{mlp_pallas.1} parent=47 // pred_region
          %342 = dma.done [#allocation9], 4096
        $region68: #{mlp_pallas.1} parent=47 // pred_fallthru
          _
        // Predicated region
        $region69: #{mlp_pallas.1} parent=47 // pred_check
          %p343 = pneg %p174
        $region70: #{mlp_pallas.1} parent=47 // pred_check_branch
          %345 = sbr.rel (%p343) target = $region72
        $region71: #{mlp_pallas.1} parent=47 // pred_region
          %347 = dma.done [#allocation12], 32
        $region72: #{mlp_pallas.1} parent=47 // pred_fallthru
          _
        %s348 = sand.u32 %s35, 1
        %s349 = scalar_lea.sflag [#allocation3], %s348
        %s350 = sand.u32 %s35, 1
        %s351 = smul.addr %s350, 16
        %s352 = scalar_lea.vmem [#allocation2], %s351
        %p353 = pneg %p48
        %p354 = pneg %p45
        %p355 = pneg %p69
        %p356 = pneg %p66
        %p357 = pneg %p90
        %p358 = pneg %p87
        %p359 = pneg %p111
        %p360 = pneg %p108
        %p361 = pneg %p132
        %p362 = pneg %p129
        %p363 = pneg %p153
        %p364 = pneg %p150
        %p365 = pneg %p174
        %p366 = pneg %p171
        %p367 = pneg %p200
        %p368 = pneg %p197
        %s369 = sand.u32 %s187, 1
        %s370 = scalar_lea.sflag [#allocation4], %s369
        %s371 = sand.u32 %s187, 1
        %s372 = smul.addr %s371, 16
        %s373 = scalar_lea.vmem [#allocation13], %s372
        %v374 = vld [vmem:[%s317] sm:$0xff]
        %v375 = vld [vmem:[%s317 + $0x8] sm:$0xff]
        %v376 = vpack.c.bf16 %v374, %v374
        %v377 = vpack.c.bf16 %v375, %v375
        %v378 = vld [vmem:[#allocation5] sm:$0xff]
        %v379 = vld [vmem:[#allocation5 + $0x8] sm:$0xff]
        %v380 = vld [vmem:[#allocation5 + $0x10] sm:$0xff]
        %v381 = vld [vmem:[#allocation5 + $0x18] sm:$0xff]
        %v382 = vld [vmem:[#allocation5 + $0x20] sm:$0xff]
        %v383 = vld [vmem:[#allocation5 + $0x28] sm:$0xff]
        %v384 = vld [vmem:[#allocation5 + $0x30] sm:$0xff]
        %v385 = vld [vmem:[#allocation5 + $0x38] sm:$0xff]
        %v386 = vld [vmem:[#allocation5 + $0x40] sm:$0xff]
        %v387 = vld [vmem:[#allocation5 + $0x48] sm:$0xff]
        %v388 = vld [vmem:[#allocation5 + $0x50] sm:$0xff]
        %v389 = vld [vmem:[#allocation5 + $0x58] sm:$0xff]
        %v390 = vld [vmem:[#allocation5 + $0x60] sm:$0xff]
        %v391 = vld [vmem:[#allocation5 + $0x68] sm:$0xff]
        %v392 = vld [vmem:[#allocation5 + $0x70] sm:$0xff]
        %v393 = vld [vmem:[#allocation5 + $0x78] sm:$0xff]
        %v394 = vld [vmem:[#allocation5 + $0x80] sm:$0xff]
        %v395 = vld [vmem:[#allocation5 + $0x88] sm:$0xff]
        %v396 = vld [vmem:[#allocation5 + $0x90] sm:$0xff]
        %v397 = vld [vmem:[#allocation5 + $0x98] sm:$0xff]
        %v398 = vld [vmem:[#allocation5 + $0xa0] sm:$0xff]
        %v399 = vld [vmem:[#allocation5 + $0xa8] sm:$0xff]
        %v400 = vld [vmem:[#allocation5 + $0xb0] sm:$0xff]
        %v401 = vld [vmem:[#allocation5 + $0xb8] sm:$0xff]
        %v402 = vld [vmem:[#allocation5 + $0xc0] sm:$0xff]
        %v403 = vld [vmem:[#allocation5 + $0xc8] sm:$0xff]
        %v404 = vld [vmem:[#allocation5 + $0xd0] sm:$0xff]
        %v405 = vld [vmem:[#allocation5 + $0xd8] sm:$0xff]
        %v406 = vld [vmem:[#allocation5 + $0xe0] sm:$0xff]
        %v407 = vld [vmem:[#allocation5 + $0xe8] sm:$0xff]
        %v408 = vld [vmem:[#allocation5 + $0xf0] sm:$0xff]
        %v409 = vld [vmem:[#allocation5 + $0xf8] sm:$0xff]
        %v410 = vld [vmem:[#allocation7] sm:$0x3]
        %v412 = vperm.slane %v410, 0
        %v413 = vperm.slane %v410, 1
        %v448 = vunpack.c.l.b16 %v378
        %v449 = vunpack.c.h.b16 %v378
        %v450 = vunpack.c.l.b16 %v379
        %v451 = vunpack.c.h.b16 %v379
        %v452 = vunpack.c.l.b16 %v380
        %v453 = vunpack.c.h.b16 %v380
        %v454 = vunpack.c.l.b16 %v381
        %v455 = vunpack.c.h.b16 %v381
        %v456 = vunpack.c.l.b16 %v382
        %v457 = vunpack.c.h.b16 %v382
        %v458 = vunpack.c.l.b16 %v383
        %v459 = vunpack.c.h.b16 %v383
        %v460 = vunpack.c.l.b16 %v384
        %v461 = vunpack.c.h.b16 %v384
        %v462 = vunpack.c.l.b16 %v385
        %v463 = vunpack.c.h.b16 %v385
        %v464 = vunpack.c.l.b16 %v386
        %v465 = vunpack.c.h.b16 %v386
        %v466 = vunpack.c.l.b16 %v387
        %v467 = vunpack.c.h.b16 %v387
        %v468 = vunpack.c.l.b16 %v388
        %v469 = vunpack.c.h.b16 %v388
        %v470 = vunpack.c.l.b16 %v389
        %v471 = vunpack.c.h.b16 %v389
        %v472 = vunpack.c.l.b16 %v390
        %v473 = vunpack.c.h.b16 %v390
        %v474 = vunpack.c.l.b16 %v391
        %v475 = vunpack.c.h.b16 %v391
        %v476 = vunpack.c.l.b16 %v392
        %v477 = vunpack.c.h.b16 %v392
        %v478 = vunpack.c.l.b16 %v393
        %v479 = vunpack.c.h.b16 %v393
        %v480 = vunpack.c.l.b16 %v394
        %v481 = vunpack.c.h.b16 %v394
        %v482 = vunpack.c.l.b16 %v395
        %v483 = vunpack.c.h.b16 %v395
        %v484 = vunpack.c.l.b16 %v396
        %v485 = vunpack.c.h.b16 %v396
        %v486 = vunpack.c.l.b16 %v397
        %v487 = vunpack.c.h.b16 %v397
        %v488 = vunpack.c.l.b16 %v398
        %v489 = vunpack.c.h.b16 %v398
        %v490 = vunpack.c.l.b16 %v399
        %v491 = vunpack.c.h.b16 %v399
        %v492 = vunpack.c.l.b16 %v400
        %v493 = vunpack.c.h.b16 %v400
        %v494 = vunpack.c.l.b16 %v401
        %v495 = vunpack.c.h.b16 %v401
        %v496 = vunpack.c.l.b16 %v402
        %v497 = vunpack.c.h.b16 %v402
        %v498 = vunpack.c.l.b16 %v403
        %v499 = vunpack.c.h.b16 %v403
        %v500 = vunpack.c.l.b16 %v404
        %v501 = vunpack.c.h.b16 %v404
        %v502 = vunpack.c.l.b16 %v405
        %v503 = vunpack.c.h.b16 %v405
        %v504 = vunpack.c.l.b16 %v406
        %v505 = vunpack.c.h.b16 %v406
        %v506 = vunpack.c.l.b16 %v407
        %v507 = vunpack.c.h.b16 %v407
        %v508 = vunpack.c.l.b16 %v408
        %v509 = vunpack.c.h.b16 %v408
        %v510 = vunpack.c.l.b16 %v409
        %v511 = vunpack.c.h.b16 %v409
        %v512 = vpack.c.b16 %v450, %v448
        %v513 = vpack.c.b16 %v451, %v449
        %v514 = vpack.c.b16 %v454, %v452
        %v515 = vpack.c.b16 %v455, %v453
        %v516 = vpack.c.b16 %v458, %v456
        %v517 = vpack.c.b16 %v459, %v457
        %v518 = vpack.c.b16 %v462, %v460
        %v519 = vpack.c.b16 %v463, %v461
        %v520 = vpack.c.b16 %v466, %v464
        %v521 = vpack.c.b16 %v467, %v465
        %v522 = vpack.c.b16 %v470, %v468
        %v523 = vpack.c.b16 %v471, %v469
        %v524 = vpack.c.b16 %v474, %v472
        %v525 = vpack.c.b16 %v475, %v473
        %v526 = vpack.c.b16 %v478, %v476
        %v527 = vpack.c.b16 %v479, %v477
        %v528 = vpack.c.b16 %v482, %v480
        %v529 = vpack.c.b16 %v483, %v481
        %v530 = vpack.c.b16 %v486, %v484
        %v531 = vpack.c.b16 %v487, %v485
        %v532 = vpack.c.b16 %v490, %v488
        %v533 = vpack.c.b16 %v491, %v489
        %v534 = vpack.c.b16 %v494, %v492
        %v535 = vpack.c.b16 %v495, %v493
        %v536 = vpack.c.b16 %v498, %v496
        %v537 = vpack.c.b16 %v499, %v497
        %v538 = vpack.c.b16 %v502, %v500
        %v539 = vpack.c.b16 %v503, %v501
        %v540 = vpack.c.b16 %v506, %v504
        %v541 = vpack.c.b16 %v507, %v505
        %v542 = vpack.c.b16 %v510, %v508
        %v543 = vpack.c.b16 %v511, %v509
        %576 = vmatpush.bf16.msra.mxu0 %v526
        %577 = vmatpush.bf16.msra.mxu0 %v524
        %578 = vmatpush.bf16.msra.mxu0 %v522
        %579 = vmatpush.bf16.msra.mxu0 %v520
        %580 = vmatpush.bf16.msra.mxu0 %v518
        %581 = vmatpush.bf16.msra.mxu0 %v516
        %582 = vmatpush.bf16.msra.mxu0 %v514
        %583 = vmatpush.bf16.msra.mxu0 %v512
        %584 = vmatmul.bf16.gmra.mxu0 %v376
        %v585 = vpop.f32.mrf.mxu0
        %v586 = vadd.f32 %v412, %v585
        %v587 = vpop.f32.mrf.mxu0
        %588 = vdwg.mxu0
        %589 = vmatpush.bf16.msra.mxu0 %v542
        %590 = vmatpush.bf16.msra.mxu0 %v540
        %591 = vmatpush.bf16.msra.mxu0 %v538
        %592 = vmatpush.bf16.msra.mxu0 %v536
        %593 = vmatpush.bf16.msra.mxu0 %v534
        %594 = vmatpush.bf16.msra.mxu0 %v532
        %595 = vmatpush.bf16.msra.mxu0 %v530
        %596 = vmatpush.bf16.msra.mxu0 %v528
        %597 = vmatmul.bf16.gmra.mxu0 %v377
        %v598 = vpop.f32.mrf.mxu0
        %v599 = vadd.f32 %v586, %v598
        %v600 = vpop.f32.mrf.mxu0
        %601 = vdwg.mxu0
        %602 = vmatpush.bf16.msra.mxu0 %v527
        %603 = vmatpush.bf16.msra.mxu0 %v525
        %604 = vmatpush.bf16.msra.mxu0 %v523
        %605 = vmatpush.bf16.msra.mxu0 %v521
        %606 = vmatpush.bf16.msra.mxu0 %v519
        %607 = vmatpush.bf16.msra.mxu0 %v517
        %608 = vmatpush.bf16.msra.mxu0 %v515
        %609 = vmatpush.bf16.msra.mxu0 %v513
        %610 = vmatmul.bf16.gmra.mxu0 %v376
        %v611 = vpop.f32.mrf.mxu0
        %v612 = vadd.f32 %v413, %v611
        %v613 = vpop.f32.mrf.mxu0
        %614 = vdwg.mxu0
        %615 = vmatpush.bf16.msra.mxu0 %v543
        %616 = vmatpush.bf16.msra.mxu0 %v541
        %617 = vmatpush.bf16.msra.mxu0 %v539
        %618 = vmatpush.bf16.msra.mxu0 %v537
        %619 = vmatpush.bf16.msra.mxu0 %v535
        %620 = vmatpush.bf16.msra.mxu0 %v533
        %621 = vmatpush.bf16.msra.mxu0 %v531
        %622 = vmatpush.bf16.msra.mxu0 %v529
        %623 = vmatmul.bf16.gmra.mxu0 %v377
        %v624 = vpop.f32.mrf.mxu0
        %v625 = vadd.f32 %v612, %v624
        %v626 = vpop.f32.mrf.mxu0
        %627 = vdwg.mxu0
        %v628 = vadd.f32 %v599, %v625
        %629 = vadd.xlane.f32.xlu0 %v628
        %v630 = vpop.xlane.xlu0 %629
        %v631 = vrcp.pop 256.0
        %v632 = vmul.f32 256.0, %v631
        %v633 = vsub.f32 1.0, %v632
        %v634 = vmul.f32 %v631, %v633
        %v635 = vadd.f32 %v631, %v634
        %vm636 = vweird.f32 %v631
        %v637 = vsel %vm636, %v631, %v635
        %v638 = vmul.f32 %v630, %v637
        %v639 = vmul.f32 %v599, %v599
        %v640 = vmul.f32 %v625, %v625
        %v641 = vadd.f32 %v639, %v640
        %642 = vadd.xlane.f32.xlu0 %v641
        %v643 = vpop.xlane.xlu0 %642
        %v644 = vmul.f32 %v643, %v637
        %v645 = vmul.f32 %v638, %v638
        %v646 = vsub.f32 %v644, %v645
        %v647 = vmax.f32 %v646, 0.0
        %v648 = vadd.f32 %v647, 1e-05
        %v649 = vrsqrt.pop %v648
        %v650 = vmul.f32 %v649, %v648
        %v651 = vmul.f32 %v650, %v649
        %v652 = vmul.f32 0.5, %v651
        %v653 = vsub.f32 1.5, %v652
        %v654 = vmul.f32 %v649, %v653
        %vm655 = vweird.f32 %v648
        %vm656 = vweird.f32 %v649
        %vm657 = vmor %vm655, %vm656
        %v658 = vsel %vm657, %v649, %v654
        %v659 = vld [vmem:[%s3] sm:$0x3]
        %v661 = vperm.slane %v659, 0
        %v662 = vperm.slane %v659, 1
        %v665 = vmul.f32 %v658, %v661
        %v666 = vmul.f32 %v658, %v662
        %v667 = vsub.f32 %v599, %v638
        %v668 = vsub.f32 %v625, %v638
        %v669 = vmul.f32 %v667, %v665
        %v670 = vmul.f32 %v668, %v666
        %v671 = vld [vmem:[#allocation8] sm:$0x3]
        %v673 = vperm.slane %v671, 0
        %v674 = vperm.slane %v671, 1
        %v677 = vadd.f32 %v669, %v673
        %v678 = vadd.f32 %v670, %v674
        %v679 = vmax.f32 %v677, 0.0
        %v680 = vmax.f32 %v678, 0.0
        %v681 = vpack.c.bf16 %v679, %v679
        %v682 = vpack.c.bf16 %v680, %v680
        %v683 = vld [vmem:[#allocation10] sm:$0xff]
        %v684 = vld [vmem:[#allocation10 + $0x8] sm:$0xff]
        %v685 = vld [vmem:[#allocation10 + $0x10] sm:$0xff]
        %v686 = vld [vmem:[#allocation10 + $0x18] sm:$0xff]
        %v687 = vld [vmem:[#allocation10 + $0x20] sm:$0xff]
        %v688 = vld [vmem:[#allocation10 + $0x28] sm:$0xff]
        %v689 = vld [vmem:[#allocation10 + $0x30] sm:$0xff]
        %v690 = vld [vmem:[#allocation10 + $0x38] sm:$0xff]
        %v691 = vld [vmem:[#allocation10 + $0x40] sm:$0xff]
        %v692 = vld [vmem:[#allocation10 + $0x48] sm:$0xff]
        %v693 = vld [vmem:[#allocation10 + $0x50] sm:$0xff]
        %v694 = vld [vmem:[#allocation10 + $0x58] sm:$0xff]
        %v695 = vld [vmem:[#allocation10 + $0x60] sm:$0xff]
        %v696 = vld [vmem:[#allocation10 + $0x68] sm:$0xff]
        %v697 = vld [vmem:[#allocation10 + $0x70] sm:$0xff]
        %v698 = vld [vmem:[#allocation10 + $0x78] sm:$0xff]
        %v699 = vld [vmem:[#allocation10 + $0x80] sm:$0xff]
        %v700 = vld [vmem:[#allocation10 + $0x88] sm:$0xff]
        %v701 = vld [vmem:[#allocation10 + $0x90] sm:$0xff]
        %v702 = vld [vmem:[#allocation10 + $0x98] sm:$0xff]
        %v703 = vld [vmem:[#allocation10 + $0xa0] sm:$0xff]
        %v704 = vld [vmem:[#allocation10 + $0xa8] sm:$0xff]
        %v705 = vld [vmem:[#allocation10 + $0xb0] sm:$0xff]
        %v706 = vld [vmem:[#allocation10 + $0xb8] sm:$0xff]
        %v707 = vld [vmem:[#allocation10 + $0xc0] sm:$0xff]
        %v708 = vld [vmem:[#allocation10 + $0xc8] sm:$0xff]
        %v709 = vld [vmem:[#allocation10 + $0xd0] sm:$0xff]
        %v710 = vld [vmem:[#allocation10 + $0xd8] sm:$0xff]
        %v711 = vld [vmem:[#allocation10 + $0xe0] sm:$0xff]
        %v712 = vld [vmem:[#allocation10 + $0xe8] sm:$0xff]
        %v713 = vld [vmem:[#allocation10 + $0xf0] sm:$0xff]
        %v714 = vld [vmem:[#allocation10 + $0xf8] sm:$0xff]
        %v715 = vld [vmem:[#allocation11] sm:$0x3]
        %v717 = vperm.slane %v715, 0
        %v718 = vperm.slane %v715, 1
        %v753 = vunpack.c.l.b16 %v683
        %v754 = vunpack.c.h.b16 %v683
        %v755 = vunpack.c.l.b16 %v684
        %v756 = vunpack.c.h.b16 %v684
        %v757 = vunpack.c.l.b16 %v685
        %v758 = vunpack.c.h.b16 %v685
        %v759 = vunpack.c.l.b16 %v686
        %v760 = vunpack.c.h.b16 %v686
        %v761 = vunpack.c.l.b16 %v687
        %v762 = vunpack.c.h.b16 %v687
        %v763 = vunpack.c.l.b16 %v688
        %v764 = vunpack.c.h.b16 %v688
        %v765 = vunpack.c.l.b16 %v689
        %v766 = vunpack.c.h.b16 %v689
        %v767 = vunpack.c.l.b16 %v690
        %v768 = vunpack.c.h.b16 %v690
        %v769 = vunpack.c.l.b16 %v691
        %v770 = vunpack.c.h.b16 %v691
        %v771 = vunpack.c.l.b16 %v692
        %v772 = vunpack.c.h.b16 %v692
        %v773 = vunpack.c.l.b16 %v693
        %v774 = vunpack.c.h.b16 %v693
        %v775 = vunpack.c.l.b16 %v694
        %v776 = vunpack.c.h.b16 %v694
        %v777 = vunpack.c.l.b16 %v695
        %v778 = vunpack.c.h.b16 %v695
        %v779 = vunpack.c.l.b16 %v696
        %v780 = vunpack.c.h.b16 %v696
        %v781 = vunpack.c.l.b16 %v697
        %v782 = vunpack.c.h.b16 %v697
        %v783 = vunpack.c.l.b16 %v698
        %v784 = vunpack.c.h.b16 %v698
        %v785 = vunpack.c.l.b16 %v699
        %v786 = vunpack.c.h.b16 %v699
        %v787 = vunpack.c.l.b16 %v700
        %v788 = vunpack.c.h.b16 %v700
        %v789 = vunpack.c.l.b16 %v701
        %v790 = vunpack.c.h.b16 %v701
        %v791 = vunpack.c.l.b16 %v702
        %v792 = vunpack.c.h.b16 %v702
        %v793 = vunpack.c.l.b16 %v703
        %v794 = vunpack.c.h.b16 %v703
        %v795 = vunpack.c.l.b16 %v704
        %v796 = vunpack.c.h.b16 %v704
        %v797 = vunpack.c.l.b16 %v705
        %v798 = vunpack.c.h.b16 %v705
        %v799 = vunpack.c.l.b16 %v706
        %v800 = vunpack.c.h.b16 %v706
        %v801 = vunpack.c.l.b16 %v707
        %v802 = vunpack.c.h.b16 %v707
        %v803 = vunpack.c.l.b16 %v708
        %v804 = vunpack.c.h.b16 %v708
        %v805 = vunpack.c.l.b16 %v709
        %v806 = vunpack.c.h.b16 %v709
        %v807 = vunpack.c.l.b16 %v710
        %v808 = vunpack.c.h.b16 %v710
        %v809 = vunpack.c.l.b16 %v711
        %v810 = vunpack.c.h.b16 %v711
        %v811 = vunpack.c.l.b16 %v712
        %v812 = vunpack.c.h.b16 %v712
        %v813 = vunpack.c.l.b16 %v713
        %v814 = vunpack.c.h.b16 %v713
        %v815 = vunpack.c.l.b16 %v714
        %v816 = vunpack.c.h.b16 %v714
        %v817 = vpack.c.b16 %v755, %v753
        %v818 = vpack.c.b16 %v756, %v754
        %v819 = vpack.c.b16 %v759, %v757
        %v820 = vpack.c.b16 %v760, %v758
        %v821 = vpack.c.b16 %v763, %v761
        %v822 = vpack.c.b16 %v764, %v762
        %v823 = vpack.c.b16 %v767, %v765
        %v824 = vpack.c.b16 %v768, %v766
        %v825 = vpack.c.b16 %v771, %v769
        %v826 = vpack.c.b16 %v772, %v770
        %v827 = vpack.c.b16 %v775, %v773
        %v828 = vpack.c.b16 %v776, %v774
        %v829 = vpack.c.b16 %v779, %v777
        %v830 = vpack.c.b16 %v780, %v778
        %v831 = vpack.c.b16 %v783, %v781
        %v832 = vpack.c.b16 %v784, %v782
        %v833 = vpack.c.b16 %v787, %v785
        %v834 = vpack.c.b16 %v788, %v786
        %v835 = vpack.c.b16 %v791, %v789
        %v836 = vpack.c.b16 %v792, %v790
        %v837 = vpack.c.b16 %v795, %v793
        %v838 = vpack.c.b16 %v796, %v794
        %v839 = vpack.c.b16 %v799, %v797
        %v840 = vpack.c.b16 %v800, %v798
        %v841 = vpack.c.b16 %v803, %v801
        %v842 = vpack.c.b16 %v804, %v802
        %v843 = vpack.c.b16 %v807, %v805
        %v844 = vpack.c.b16 %v808, %v806
        %v845 = vpack.c.b16 %v811, %v809
        %v846 = vpack.c.b16 %v812, %v810
        %v847 = vpack.c.b16 %v815, %v813
        %v848 = vpack.c.b16 %v816, %v814
        %881 = vmatpush.bf16.msra.mxu0 %v831
        %882 = vmatpush.bf16.msra.mxu0 %v829
        %883 = vmatpush.bf16.msra.mxu0 %v827
        %884 = vmatpush.bf16.msra.mxu0 %v825
        %885 = vmatpush.bf16.msra.mxu0 %v823
        %886 = vmatpush.bf16.msra.mxu0 %v821
        %887 = vmatpush.bf16.msra.mxu0 %v819
        %888 = vmatpush.bf16.msra.mxu0 %v817
        %889 = vmatmul.bf16.gmra.mxu0 %v681
        %v890 = vpop.f32.mrf.mxu0
        %v891 = vadd.f32 %v717, %v890
        %v892 = vpop.f32.mrf.mxu0
        %893 = vdwg.mxu0
        %894 = vmatpush.bf16.msra.mxu0 %v847
        %895 = vmatpush.bf16.msra.mxu0 %v845
        %896 = vmatpush.bf16.msra.mxu0 %v843
        %897 = vmatpush.bf16.msra.mxu0 %v841
        %898 = vmatpush.bf16.msra.mxu0 %v839
        %899 = vmatpush.bf16.msra.mxu0 %v837
        %900 = vmatpush.bf16.msra.mxu0 %v835
        %901 = vmatpush.bf16.msra.mxu0 %v833
        %902 = vmatmul.bf16.gmra.mxu0 %v682
        %v903 = vpop.f32.mrf.mxu0
        %v904 = vadd.f32 %v891, %v903
        %v905 = vpop.f32.mrf.mxu0
        %906 = vdwg.mxu0
        %907 = vmatpush.bf16.msra.mxu0 %v832
        %908 = vmatpush.bf16.msra.mxu0 %v830
        %909 = vmatpush.bf16.msra.mxu0 %v828
        %910 = vmatpush.bf16.msra.mxu0 %v826
        %911 = vmatpush.bf16.msra.mxu0 %v824
        %912 = vmatpush.bf16.msra.mxu0 %v822
        %913 = vmatpush.bf16.msra.mxu0 %v820
        %914 = vmatpush.bf16.msra.mxu0 %v818
        %915 = vmatmul.bf16.gmra.mxu0 %v681
        %v916 = vpop.f32.mrf.mxu0
        %v917 = vadd.f32 %v718, %v916
        %v918 = vpop.f32.mrf.mxu0
        %919 = vdwg.mxu0
        %920 = vmatpush.bf16.msra.mxu0 %v848
        %921 = vmatpush.bf16.msra.mxu0 %v846
        %922 = vmatpush.bf16.msra.mxu0 %v844
        %923 = vmatpush.bf16.msra.mxu0 %v842
        %924 = vmatpush.bf16.msra.mxu0 %v840
        %925 = vmatpush.bf16.msra.mxu0 %v838
        %926 = vmatpush.bf16.msra.mxu0 %v836
        %927 = vmatpush.bf16.msra.mxu0 %v834
        %928 = vmatmul.bf16.gmra.mxu0 %v682
        %v929 = vpop.f32.mrf.mxu0
        %v930 = vadd.f32 %v917, %v929
        %v931 = vpop.f32.mrf.mxu0
        %932 = vdwg.mxu0
        %933 = vst [vmem:[%s373] sm:$0xff] %v904
        %934 = vst [vmem:[%s373 + $0x8] sm:$0xff] %v930
        %s935 = sand.u32 %s187, 1
        %s936 = scalar_lea.sflag [#allocation4], %s935
        %s937 = sand.u32 %s187, 1
        %s938 = smul.addr %s937, 16
        %s939 = scalar_lea.vmem [#allocation13], %s938
        // Predicated region
        $region73: #{mlp_pallas.1} parent=47 // pred_check
          %p940 = pneg %p197
        $region74: #{mlp_pallas.1} parent=47 // pred_check_branch
          %942 = sbr.rel (%p940) target = $region76
        $region75: #{mlp_pallas.1} parent=47 // pred_region
          %944 = vsyncadd %s936, 0
          %s945 = smul.addr %s27, 2
          %s946 = smul.addr %s945, 8
          %s947 = scalar_lea.hbm %s7, %s946
          %s949 = sshll.u32 %s939, 4
          %s950 = int_to_ptr.vmem [resolvable:$true] %s949
          %s951 = sshll.u32 %s947, 4
          %s952 = int_to_ptr.hbm [resolvable:$true] %s951
          %954 = dma.vmem_to_hbm [thread:$0]  %s950, 256, %s952, %s936
        $region76: #{mlp_pallas.1} parent=47 // pred_fallthru
          _
      $region48: #{mlp_pallas.1} parent=5 // pred_fallthru
        _
      %p955 = scmp.le.s32.totalorder 2, %s22
      // Predicated region
      $region77: #{mlp_pallas.1} parent=5 // pred_check
        %p956 = pneg %p955
      $region78: #{mlp_pallas.1} parent=5 // pred_check_branch
        %958 = sbr.rel (%p956) target = $region80
      $region79: #{mlp_pallas.1} parent=5 // pred_region
        %s959 = ssub.s32 %s22, 2
        // Predicated region
        $region81: #{mlp_pallas.1} parent=79 // pred_check
          %p960 = pneg %p203
        $region82: #{mlp_pallas.1} parent=79 // pred_check_branch
          %962 = sbr.rel (%p960) target = $region84
        $region83: #{mlp_pallas.1} parent=79 // pred_region
          %s963 = sand.u32 %s188, 1
          %s964 = scalar_lea.sflag [#allocation4], %s963
          %s965 = sand.u32 %s188, 1
          %s966 = smul.addr %s965, 16
          %s967 = scalar_lea.vmem [#allocation13], %s966
          %969 = dma.done %s964, 256
        $region84: #{mlp_pallas.1} parent=79 // pred_fallthru
          _
      $region80: #{mlp_pallas.1} parent=5 // pred_fallthru
        _
    $region6: #{mlp_pallas.1} parent=1 // loop_footer
      %s26 = sadd.s32 1, %s22
    $region7: #{mlp_pallas.1} parent=1 // loop_footer_branch
      %21 = sbr.rel target = $region3
    $region8: #{mlp_pallas.1} parent=1 // loop_exit
      _
    %970 = vsyncpa [#allocation3], 1
    %s971 = scalar_lea.sflag [#allocation3], 1
    %972 = vsyncpa %s971, 1
    %973 = vsyncpa [#allocation6], 1
    %974 = vsyncpa [#allocation9], 1
    %975 = vsyncpa [#allocation12], 1
    %976 = vsyncpa [#allocation4], 1
    %s977 = scalar_lea.sflag [#allocation4], 1
    %978 = vsyncpa %s977, 1

</llo_original>
